<compile_context>
chip_gen: v7x
topology: tpu7x:2x2x1
jax: 0.10.0
libtpu: 0.0.40
codegen_flags: <defaults>
</compile_context>

<pallas_src>
import math

import jax
import jax.numpy as jnp
from jax import lax
from jax.experimental import pallas as pl
from jax.experimental.pallas import tpu as pltpu

LANES = 128
_INT32_MAX = 2 ** 31 - 1
_INT32_MIN = -(2 ** 31)


def _make_argmax_kernel(*, k, G, compute_dtype, neutral,
                        needs_tail_mask, tail_full_slices, tail_rem_rows):
    """Build the streaming-argmax kernel.

    All configuration (slab height G, slices-per-tile k, neutral value, tail
    handling) is baked in as Python values -> nothing is captured as a traced
    constant.
    """

    def fold_into(x_ref, oval_ref, oidx_ref, t, num_full_slices, rem_rows):
        # Accumulators live in registers for the duration of one tile.
        av = oval_ref[...]                       # (G, 128) running max
        ai = oidx_ref[...]                       # (G, 128) running slice id
        sid0 = t * k                             # global id of this tile's 1st slice

        for kk in range(num_full_slices):        # static unroll
            xs = x_ref[kk * G:(kk + 1) * G, :].astype(compute_dtype)
            better = xs > av                     # strict > keeps first occurrence
            av = jnp.where(better, xs, av)
            ai = jnp.where(better, sid0 + kk, ai)   # scalar splat select

        if rem_rows:                             # static: only the straddling
            kk = num_full_slices                 # slice of the very last tile
            xs = x_ref[kk * G:(kk + 1) * G, :].astype(compute_dtype)
            rix = lax.broadcasted_iota(jnp.int32, (G, LANES), 0)
            xs = jnp.where(rix < rem_rows, xs, neutral)
            better = xs > av
            av = jnp.where(better, xs, av)
            ai = jnp.where(better, sid0 + kk, ai)

        oval_ref[...] = av
        oidx_ref[...] = ai

    def kernel(x_ref, oval_ref, oidx_ref):
        t = pl.program_id(0)
        nt = pl.num_programs(0)

        @pl.when(t == 0)
        def _():
            oval_ref[...] = jnp.full((G, LANES), neutral, compute_dtype)
            oidx_ref[...] = jnp.zeros((G, LANES), jnp.int32)

        if needs_tail_mask:
            # Hot path (all but the last tile): no masking code at all.
            @pl.when(t < nt - 1)
            def _():
                fold_into(x_ref, oval_ref, oidx_ref, t, k, 0)

            # Last tile: Pallas pads the boundary block with garbage rows;
            # process only the valid slices and row-mask the straddler.
            @pl.when(t == nt - 1)
            def _():
                fold_into(x_ref, oval_ref, oidx_ref, t,
                          tail_full_slices, tail_rem_rows)
        else:
            fold_into(x_ref, oval_ref, oidx_ref, t, k, 0)

    return kernel


def argmax_pallas(x, *, tile_rows=4096):
    """torch.argmax(x) equivalent: global argmax over the flattened tensor.

    tile_rows: streaming block height (rows of 128 elements).  4096 (2 MiB f32)
    is safe for v5e/v6e/v7x default scoped VMEM; use 8192 on v7x.
    """
    flat = x.reshape(-1)                         # free for contiguous input
    n = flat.shape[0]
    if n == 0:
        raise ValueError("argmax of an empty tensor is undefined")

    # --- dtype dispatch: compare in the cheapest exact dtype -----------------
    dt = flat.dtype
    if dt == jnp.bfloat16:
        compute_dtype, neutral = jnp.bfloat16, float("-inf")   # native bf16
    elif jnp.issubdtype(dt, jnp.floating):
        compute_dtype, neutral = jnp.float32, float("-inf")    # f32 / f16->f32
    elif dt == jnp.bool_:
        flat = flat.astype(jnp.int32)
        compute_dtype, neutral = jnp.int32, _INT32_MIN
    elif jnp.issubdtype(dt, jnp.integer):
        if dt.itemsize > 4 or dt == jnp.uint32:
            # TODO(synk): values outside int32 range are not exactly representable.
            flat = flat.astype(jnp.int32)
        compute_dtype, neutral = jnp.int32, _INT32_MIN          # native int compare
    else:
        # TODO(synk): exotic dtypes (complex, fp8, ...) fall back to an f32 copy.
        flat = flat.astype(jnp.float32)
        compute_dtype, neutral = jnp.float32, float("-inf")

    # --- (rows, 128) layout; minimal pad only when n % 128 != 0 --------------
    rows = pl.cdiv(n, LANES)
    if rows * LANES != n:
        pad = jnp.full((rows * LANES - n,), neutral, dtype=flat.dtype)
        flat = jnp.concatenate([flat, pad])
    x2d = flat.reshape(rows, LANES)

    # --- tiling ---------------------------------------------------------------
    if rows <= tile_rows:
        tr = rows                                 # one block covers everything
    else:
        tr = max(32, (tile_rows // 32) * 32)      # big streaming block
    G = math.gcd(tr, 32)                          # accumulator slab height
    k = tr // G                                   # fold slices per tile
    num_tiles = pl.cdiv(rows, tr)

    tail_rows = rows - (num_tiles - 1) * tr       # valid rows in last tile
    needs_tail_mask = tail_rows != tr             # static Python bool
    tail_full_slices = tail_rows // G
    tail_rem_rows = tail_rows % G

    kernel = _make_argmax_kernel(
        k=k, G=G, compute_dtype=compute_dtype, neutral=neutral,
        needs_tail_mask=needs_tail_mask,
        tail_full_slices=tail_full_slices, tail_rem_rows=tail_rem_rows)

    val_slab, sid_slab = pl.pallas_call(
        kernel,
        out_shape=(
            jax.ShapeDtypeStruct((G, LANES), compute_dtype),   # per-position max
            jax.ShapeDtypeStruct((G, LANES), jnp.int32),       # per-position slice id
        ),
        grid=(num_tiles,),
        in_specs=[pl.BlockSpec((tr, LANES), lambda t: (t, 0))],
        out_specs=(
            pl.BlockSpec((G, LANES), lambda t: (0, 0)),        # resident accumulators
            pl.BlockSpec((G, LANES), lambda t: (0, 0)),
        ),
        compiler_params=pltpu.CompilerParams(
            dimension_semantics=("arbitrary",)),               # carried reduction
    )(x2d)

    # --- tiny final reduce (at most 32x128 elements) in plain JAX ------------
    base = (lax.broadcasted_iota(jnp.int32, (G, LANES), 0) * LANES
            + lax.broadcasted_iota(jnp.int32, (G, LANES), 1))
    cand = sid_slab * (G * LANES) + base          # flat index of each candidate
    best = jnp.max(val_slab)
    # min flat index among positions holding the max -> first occurrence.
    # NOTE: int32 result; PyTorch returns int64 (same value for < 2**31 elems).
    return jnp.min(jnp.where(val_slab == best, cand, _INT32_MAX))


if __name__ == "__main__":
    key = jax.random.PRNGKey(0)
    x = jax.random.normal(key, (2, 4, 16, 16), dtype=jnp.float32)  # NCHW input

    idx = argmax_pallas(x)
    jax.block_until_ready(idx)

    # Sanity check against the JAX reference (same semantics as torch.argmax).
    ref = jnp.argmax(x.reshape(-1))
    assert int(idx) == int(ref), (int(idx), int(ref))

    print("KERNEL_OK")
</pallas_src>

<mosaic_0001>
module attributes {stable_mosaic.version = 11 : i64} {
  func.func @kernel(%arg0: i32, %arg1: memref<16x128xf32, #tpu.memory_space<vmem>>, %arg2: memref<16x128xf32, #tpu.memory_space<vmem>>, %arg3: memref<16x128xi32, #tpu.memory_space<vmem>>) attributes {dimension_semantics = [#tpu.dimension_semantics<arbitrary>], iteration_bounds = array<i64: 1>, scalar_prefetch = 0 : i64, scratch_operands = 0 : i64, tpu.core_type = #tpu.core_type<tc>, window_params = [{transform_indices = @transform_0, window_bounds = array<i64: 16, 128>}, {pipeline_mode = #tpu.pipeline_mode<synchronous>, transform_indices = @transform_1, window_bounds = array<i64: 16, 128>}, {pipeline_mode = #tpu.pipeline_mode<synchronous>, transform_indices = @transform_2, window_bounds = array<i64: 16, 128>}]} {
    %c0_i32 = arith.constant 0 : i32
    %0 = arith.cmpi eq, %arg0, %c0_i32 : i32
    %1 = arith.extui %0 : i1 to i32
    %c0_i32_0 = arith.constant 0 : i32
    %2 = arith.cmpi ne, %1, %c0_i32_0 : i32
    scf.if %2 {
      %cst = arith.constant 0xFF800000 : f32
      %14 = vector.broadcast %cst : f32 to vector<16x128xf32>
      %c0_11 = arith.constant 0 : index
      %c0_12 = arith.constant 0 : index
      %15 = vector.load %arg2[%c0_11, %c0_12] : memref<16x128xf32, #tpu.memory_space<vmem>>, vector<16x128xf32>
      tpu.vector_store %arg2[%c0_11, %c0_12], %14 {strides = array<i32>} : memref<16x128xf32, #tpu.memory_space<vmem>>, vector<16x128xf32>,
      %c0_i32_13 = arith.constant 0 : i32
      %16 = vector.broadcast %c0_i32_13 : i32 to vector<16x128xi32>
      %c0_14 = arith.constant 0 : index
      %c0_15 = arith.constant 0 : index
      %17 = vector.load %arg3[%c0_14, %c0_15] : memref<16x128xi32, #tpu.memory_space<vmem>>, vector<16x128xi32>
      tpu.vector_store %arg3[%c0_14, %c0_15], %16 {strides = array<i32>} : memref<16x128xi32, #tpu.memory_space<vmem>>, vector<16x128xi32>,
    } else {
    }
    %c0 = arith.constant 0 : index
    %c0_1 = arith.constant 0 : index
    %3 = vector.load %arg2[%c0, %c0_1] : memref<16x128xf32, #tpu.memory_space<vmem>>, vector<16x128xf32>
    %c0_2 = arith.constant 0 : index
    %c0_3 = arith.constant 0 : index
    %4 = vector.load %arg3[%c0_2, %c0_3] : memref<16x128xi32, #tpu.memory_space<vmem>>, vector<16x128xi32>
    %c1_i32 = arith.constant 1 : i32
    %5 = arith.muli %arg0, %c1_i32 : i32
    %c0_4 = arith.constant 0 : index
    %c0_5 = arith.constant 0 : index
    %6 = vector.load %arg1[%c0_4, %c0_5] : memref<16x128xf32, #tpu.memory_space<vmem>>, vector<16x128xf32>
    %7 = arith.cmpf ogt, %6, %3 : vector<16x128xf32>
    %8 = arith.select %7, %6, %3 : vector<16x128xi1>, vector<16x128xf32>
    %c0_i32_6 = arith.constant 0 : i32
    %9 = arith.addi %5, %c0_i32_6 : i32
    %10 = vector.broadcast %9 : i32 to vector<16x128xi32>
    %11 = arith.select %7, %10, %4 : vector<16x128xi1>, vector<16x128xi32>
    %c0_7 = arith.constant 0 : index
    %c0_8 = arith.constant 0 : index
    %12 = vector.load %arg2[%c0_7, %c0_8] : memref<16x128xf32, #tpu.memory_space<vmem>>, vector<16x128xf32>
    tpu.vector_store %arg2[%c0_7, %c0_8], %8 {strides = array<i32>} : memref<16x128xf32, #tpu.memory_space<vmem>>, vector<16x128xf32>,
    %c0_9 = arith.constant 0 : index
    %c0_10 = arith.constant 0 : index
    %13 = vector.load %arg3[%c0_9, %c0_10] : memref<16x128xi32, #tpu.memory_space<vmem>>, vector<16x128xi32>
    tpu.vector_store %arg3[%c0_9, %c0_10], %11 {strides = array<i32>} : memref<16x128xi32, #tpu.memory_space<vmem>>, vector<16x128xi32>,
    return
  }
  func.func @transform_0(%arg0: i32) -> (i32, i32) {
    %c0_i32 = arith.constant 0 : i32
    %c0_i32_0 = arith.constant 0 : i32
    return %arg0, %c0_i32 : i32, i32
  }
  func.func @transform_1(%arg0: i32) -> (i32, i32) {
    %c0_i32 = arith.constant 0 : i32
    %c0_i32_0 = arith.constant 0 : i32
    %c0_i32_1 = arith.constant 0 : i32
    return %c0_i32, %c0_i32_0 : i32, i32
  }
  func.func @transform_2(%arg0: i32) -> (i32, i32) {
    %c0_i32 = arith.constant 0 : i32
    %c0_i32_0 = arith.constant 0 : i32
    %c0_i32_1 = arith.constant 0 : i32
    return %c0_i32, %c0_i32_0 : i32, i32
  }
}

</mosaic_0001>

<llo_original>
// kernel: tpu_custom_call.1
$region0: #{tpu_custom_call.1}
  #allocation0 [shape = 'u32[]', space=smem, size = 0x4, offset = 0x4, fixed_abs, tag = 'smem constant byte address 0x4 - core index']
  #allocation1 [shape = 'u32[144,128]{1,0:T(1,128)}', space=vmem, size = 0x12000, scoped, tag = 'internal scratch']
  %s0 = inlined_call_operand.hbm [shape: f32[16,128], index: 0, kind: input, shape index: {}]
  %s1 = inlined_call_operand.hbm [shape: f32[16,128], index: 1, kind: output, shape index: {0}]
  %s2 = inlined_call_operand.hbm [shape: s32[16,128], index: 2, kind: output, shape index: {1}]
  %3 = xla_tuple %s1, %s2
  %s4 = sld [smem:[#allocation0]]
  $region30: #{tpu_custom_call.1} parent=0
    _
  %s6 = ssub.s32 1, %s4
  %s7 = scalar_select 0, %s6, %s4
  $region1: #{tpu_custom_call.1} parent=0
    #allocation2 [shape = 'u8[8192]{0}', space=vmem, size = 0x2000, scoped, tag = 'input window, operand 0, single buffered']
    #allocation3 [shape = 's32[1]{0}', space=sflag, size = 0x4, scoped, tag = 'scoped memory for tpu_custom_call.1']
    #allocation4 [shape = 's32[1]{0}', space=sflag, size = 0x4, scoped, tag = 'scoped memory for tpu_custom_call.1']
    #allocation5 [shape = 'u8[8192]{0}', space=vmem, size = 0x2000, scoped, tag = 'output window, operand 0, single buffered']
    #allocation6 [shape = 'u8[8192]{0}', space=vmem, size = 0x2000, scoped, tag = 'output window, operand 1, single buffered']
    #allocation7 [shape = 's32[1]{0}', space=sflag, size = 0x4, scoped, tag = 'scoped memory for tpu_custom_call.1']
    %8 = vsyncpa [#allocation3], 0
    %9 = vsyncpa [#allocation4], 0
    %10 = vsyncpa [#allocation7], 0
    // Predicated region
    $region2: #{tpu_custom_call.1} parent=1 // pred_check
      _
    $region3: #{tpu_custom_call.1} parent=1 // pred_check_branch
      %12 = sbr.rel (0) target = $region5
    $region4: #{tpu_custom_call.1} parent=1 // pred_region
      %s14 = ssub.s32 256, 256
      %15 = vsyncadd [#allocation3], %s14
      %s16 = sshll.u32 [#allocation2], 4
      %s17 = int_to_ptr.vmem [resolvable:$true] %s16
      %22 = dma.hbm_to_vmem [thread:$0]  %s0, 256, %s17, [#allocation3], 128, 128, 8
    $region5: #{tpu_custom_call.1} parent=1 // pred_fallthru
      _
    // Predicated region
    $region6: #{tpu_custom_call.1} parent=1 // pred_check
      _
    $region7: #{tpu_custom_call.1} parent=1 // pred_check_branch
      %24 = sbr.rel (0) target = $region9
    $region8: #{tpu_custom_call.1} parent=1 // pred_region
      %25 = dma.done [#allocation3], 256
    $region9: #{tpu_custom_call.1} parent=1 // pred_fallthru
      _
    %p26 = scmp.eq.s32.totalorder 0, 0
    // Predicated region
    $region10: #{tpu_custom_call.1} parent=1 // pred_check
      %p27 = pneg %p26
    $region11: #{tpu_custom_call.1} parent=1 // pred_check_branch
      %29 = sbr.rel (%p27) target = $region13
    $region12: #{tpu_custom_call.1} parent=1 // pred_region
      %30 = vst [vmem:[#allocation5] sm:$0xff] -inf
      %31 = vst [vmem:[#allocation5 + $0x8] sm:$0xff] -inf
      %32 = vst [vmem:[#allocation6] sm:$0xff] 0
      %33 = vst [vmem:[#allocation6 + $0x8] sm:$0xff] 0
    $region13: #{tpu_custom_call.1} parent=1 // pred_fallthru
      _
    %v34 = vld [vmem:[#allocation5] sm:$0xff]
    %v35 = vld [vmem:[#allocation5 + $0x8] sm:$0xff]
    %v36 = vld [vmem:[#allocation6] sm:$0xff]
    %v37 = vld [vmem:[#allocation6 + $0x8] sm:$0xff]
    %v38 = vld [vmem:[#allocation2] sm:$0xff]
    %v39 = vld [vmem:[#allocation2 + $0x8] sm:$0xff]
    %vm40 = vcmp.gt.f32.partialorder %v38, %v34
    %vm41 = vcmp.gt.f32.partialorder %v39, %v35
    %v42 = vsel %vm40, %v38, %v34
    %v43 = vsel %vm41, %v39, %v35
    %v44 = vstv 0
    %v45 = vsel %vm40, %v44, %v36
    %v46 = vsel %vm41, %v44, %v37
    %47 = vst [vmem:[#allocation5] sm:$0xff] %v42
    %48 = vst [vmem:[#allocation5 + $0x8] sm:$0xff] %v43
    %49 = vst [vmem:[#allocation6] sm:$0xff] %v45
    %50 = vst [vmem:[#allocation6 + $0x8] sm:$0xff] %v46
    // Predicated region
    $region14: #{tpu_custom_call.1} parent=1 // pred_check
      _
    $region15: #{tpu_custom_call.1} parent=1 // pred_check_branch
      %52 = sbr.rel (0) target = $region17
    $region16: #{tpu_custom_call.1} parent=1 // pred_region
      %s54 = ssub.s32 256, 256
      %55 = vsyncadd [#allocation4], %s54
      %s56 = sshll.u32 [#allocation5], 4
      %s57 = int_to_ptr.vmem [resolvable:$true] %s56
      %62 = dma.vmem_to_hbm [thread:$0]  %s57, 256, %s1, [#allocation4], 128, 128, 8
    $region17: #{tpu_custom_call.1} parent=1 // pred_fallthru
      _
    // Predicated region
    $region18: #{tpu_custom_call.1} parent=1 // pred_check
      _
    $region19: #{tpu_custom_call.1} parent=1 // pred_check_branch
      %64 = sbr.rel (0) target = $region21
    $region20: #{tpu_custom_call.1} parent=1 // pred_region
      %s66 = ssub.s32 256, 256
      %67 = vsyncadd [#allocation7], %s66
      %s68 = sshll.u32 [#allocation6], 4
      %s69 = int_to_ptr.vmem [resolvable:$true] %s68
      %74 = dma.vmem_to_hbm [thread:$0]  %s69, 256, %s2, [#allocation7], 128, 128, 8
    $region21: #{tpu_custom_call.1} parent=1 // pred_fallthru
      _
    // Predicated region
    $region22: #{tpu_custom_call.1} parent=1 // pred_check
      _
    $region23: #{tpu_custom_call.1} parent=1 // pred_check_branch
      %76 = sbr.rel (0) target = $region25
    $region24: #{tpu_custom_call.1} parent=1 // pred_region
      %77 = dma.done [#allocation4], 256
    $region25: #{tpu_custom_call.1} parent=1 // pred_fallthru
      _
    // Predicated region
    $region26: #{tpu_custom_call.1} parent=1 // pred_check
      _
    $region27: #{tpu_custom_call.1} parent=1 // pred_check_branch
      %79 = sbr.rel (0) target = $region29
    $region28: #{tpu_custom_call.1} parent=1 // pred_region
      %80 = dma.done [#allocation7], 256
    $region29: #{tpu_custom_call.1} parent=1 // pred_fallthru
      _
    %81 = vsyncpa [#allocation3], 1
    %82 = vsyncpa [#allocation4], 1
    %83 = vsyncpa [#allocation7], 1

</llo_original>
